<compile_context>
chip_gen: v6e
topology: v6e:2x2x1
jax: 0.10.0
libtpu: 0.0.40
codegen_flags: <defaults>
</compile_context>

<pallas_src>
import functools

import jax
import jax.numpy as jnp
from jax.experimental import pallas as pl
from jax.experimental.pallas import tpu as pltpu

_VMEM_LIMIT = 32 * 1024 * 1024  # safe on v5e/v6e/v7x; clears FFN-up tiles on v5e


def _cparams(*semantics):
    return pltpu.CompilerParams(dimension_semantics=semantics,
                                vmem_limit_bytes=_VMEM_LIMIT)


def _pick_tm(m, cap=256):
    # Single block when small (block == full dim is always layout-legal); otherwise cap at 256
    # and let Pallas mask the ragged last block (rows are independent in every kernel below).
    return m if m <= cap else cap


# ----------------------------- Pallas kernels ------------------------------

def _linear_kernel(x_ref, w_ref, b_ref, o_ref, *, activation):
    """o = act(x @ w + b). x:[TM,K] bf16, w:[K,N] bf16, b:[1,N] f32, o:[TM,N] bf16."""
    y = jnp.dot(x_ref[...], w_ref[...], preferred_element_type=jnp.float32)
    y = y + b_ref[...]
    if activation == "gelu":
        # tanh-approximate GELU in f32 on the accumulator.
        # TODO(synk): switch to erf-GELU if exact parity with HF BERT is required (~1e-3 diff).
        c = jnp.float32(0.7978845608028654)  # sqrt(2/pi)
        y = 0.5 * y * (1.0 + jnp.tanh(c * (y + 0.044715 * y * y * y)))
    o_ref[...] = y.astype(o_ref.dtype)


def _linear_res_ln_kernel(x_ref, w_ref, b_ref, r_ref, g_ref, bb_ref, o_ref, *, eps):
    """o = LayerNorm(x @ w + b + residual); stats in f32, store bf16.

    N is the full hidden dim (no N tiling), so the axis=-1 LN stats are block-local.
    """
    y = jnp.dot(x_ref[...], w_ref[...], preferred_element_type=jnp.float32)
    y = y + b_ref[...] + r_ref[...].astype(jnp.float32)
    mean = jnp.mean(y, axis=-1, keepdims=True)
    var = jnp.mean((y - mean) * (y - mean), axis=-1, keepdims=True)
    inv = jax.lax.rsqrt(var + eps)
    o_ref[...] = ((y - mean) * inv * g_ref[...] + bb_ref[...]).astype(o_ref.dtype)


def _qkv_kernel(x_ref, w_ref, b_ref, q_ref, k_ref, v_ref):
    """Fused QKV projection with an in-kernel split into three lane-dense [TM, D] outputs."""
    y = jnp.dot(x_ref[...], w_ref[...], preferred_element_type=jnp.float32)
    y = y + b_ref[...]
    d = q_ref.shape[-1]
    q_ref[...] = y[:, :d].astype(q_ref.dtype)
    k_ref[...] = y[:, d:2 * d].astype(k_ref.dtype)
    v_ref[...] = y[:, 2 * d:3 * d].astype(v_ref.dtype)


def _layernorm_kernel(x_ref, g_ref, b_ref, o_ref, *, eps):
    x = x_ref[...].astype(jnp.float32)
    mean = jnp.mean(x, axis=-1, keepdims=True)
    var = jnp.mean((x - mean) * (x - mean), axis=-1, keepdims=True)
    inv = jax.lax.rsqrt(var + eps)
    o_ref[...] = ((x - mean) * inv * g_ref[...] + b_ref[...]).astype(o_ref.dtype)


def _attention_kernel(q_ref, k_ref, v_ref, mask_ref, o_ref, *,
                      heads_in_block, head_dim, scale):
    """One (batch, head-group) step. q/k/v:[T, G*Dh] bf16, mask:[1,T] f32 additive,
    o:[T, G*Dh] bf16 with heads already merged along lanes (lane-dense output)."""
    # Fold 1/sqrt(Dh) into q (T*Dh multiplies instead of T*T on the scores).
    q = q_ref[...] * jnp.array(scale, dtype=q_ref.dtype)
    k = k_ref[...]
    v = v_ref[...]
    mask = mask_ref[...]                                    # [1, T] broadcasts over queries
    ctxs = []
    for hh in range(heads_in_block):                        # static, unrolled (G is small)
        lo = hh * head_dim
        qh = q[:, lo:lo + head_dim]
        kh = k[:, lo:lo + head_dim]
        vh = v[:, lo:lo + head_dim]
        s = jax.lax.dot_general(qh, kh, (((1,), (1,)), ((), ())),
                                preferred_element_type=jnp.float32)   # [T, T] = q @ k^T
        s = s + mask
        m = jnp.max(s, axis=-1, keepdims=True)              # softmax fully in f32
        p = jnp.exp(s - m)
        l = jnp.sum(p, axis=-1, keepdims=True)
        ctx = jax.lax.dot_general(p.astype(v.dtype), vh, (((1,), (0,)), ((), ())),
                                  preferred_element_type=jnp.float32)  # [T, Dh]
        # Deferred normalization: scale the [T, Dh] context, not the [T, T] probabilities.
        ctx = ctx * pl.reciprocal(l, approx=True)
        ctxs.append(ctx)
    out = ctxs[0] if heads_in_block == 1 else jnp.concatenate(ctxs, axis=-1)
    o_ref[...] = out.astype(o_ref.dtype)


# ------------------------------ Pallas wrappers -----------------------------

def pallas_linear(x, w, b, activation=None, tm=256):
    """Row-tiled linear: act(x @ w + b). x:[M,K], w:[K,N] bf16, b:[N] -> [M,N] bf16."""
    M, K = x.shape
    N = w.shape[1]
    TM = _pick_tm(M, tm)
    return pl.pallas_call(
        functools.partial(_linear_kernel, activation=activation),
        out_shape=jax.ShapeDtypeStruct((M, N), jnp.bfloat16),
        grid=(pl.cdiv(M, TM),),
        in_specs=[
            pl.BlockSpec((TM, K), lambda i: (i, 0)),
            pl.BlockSpec((K, N), lambda i: (0, 0)),     # weight resident across M axis
            pl.BlockSpec((1, N), lambda i: (0, 0)),
        ],
        out_specs=pl.BlockSpec((TM, N), lambda i: (i, 0)),
        compiler_params=_cparams("parallel"),
    )(x.astype(jnp.bfloat16), w.astype(jnp.bfloat16),
      b.reshape(1, N).astype(jnp.float32))


def pallas_linear_res_ln(x, w, b, residual, gamma, beta, eps=1e-12, tm=256):
    """Fused (x @ w + b + residual) -> LayerNorm -> bf16. x:[M,K], w:[K,D], residual:[M,D]."""
    M, K = x.shape
    N = w.shape[1]
    TM = _pick_tm(M, tm)
    return pl.pallas_call(
        functools.partial(_linear_res_ln_kernel, eps=eps),
        out_shape=jax.ShapeDtypeStruct((M, N), jnp.bfloat16),
        grid=(pl.cdiv(M, TM),),
        in_specs=[
            pl.BlockSpec((TM, K), lambda i: (i, 0)),
            pl.BlockSpec((K, N), lambda i: (0, 0)),
            pl.BlockSpec((1, N), lambda i: (0, 0)),
            pl.BlockSpec((TM, N), lambda i: (i, 0)),    # residual rides along with x rows
            pl.BlockSpec((1, N), lambda i: (0, 0)),
            pl.BlockSpec((1, N), lambda i: (0, 0)),
        ],
        out_specs=pl.BlockSpec((TM, N), lambda i: (i, 0)),
        compiler_params=_cparams("parallel"),
    )(x.astype(jnp.bfloat16), w.astype(jnp.bfloat16),
      b.reshape(1, N).astype(jnp.float32), residual.astype(jnp.bfloat16),
      gamma.reshape(1, N).astype(jnp.float32), beta.reshape(1, N).astype(jnp.float32))


def pallas_qkv(x, w, b, tm=256):
    """Fused QKV projection producing three lane-dense [M, D] bf16 outputs (no XLA split)."""
    M, K = x.shape
    N3 = w.shape[1]
    D = N3 // 3
    TM = _pick_tm(M, tm)
    out = jax.ShapeDtypeStruct((M, D), jnp.bfloat16)
    return pl.pallas_call(
        _qkv_kernel,
        out_shape=(out, out, out),
        grid=(pl.cdiv(M, TM),),
        in_specs=[
            pl.BlockSpec((TM, K), lambda i: (i, 0)),
            pl.BlockSpec((K, N3), lambda i: (0, 0)),
            pl.BlockSpec((1, N3), lambda i: (0, 0)),
        ],
        out_specs=(pl.BlockSpec((TM, D), lambda i: (i, 0)),
                   pl.BlockSpec((TM, D), lambda i: (i, 0)),
                   pl.BlockSpec((TM, D), lambda i: (i, 0))),
        compiler_params=_cparams("parallel"),
    )(x.astype(jnp.bfloat16), w.astype(jnp.bfloat16),
      b.reshape(1, N3).astype(jnp.float32))


def pallas_layernorm(x, gamma, beta, eps=1e-12, tm=256):
    """Row-tiled LayerNorm over [M, D]; stats in f32, output bf16 (embedding LN)."""
    M, D = x.shape
    TM = _pick_tm(M, tm)
    return pl.pallas_call(
        functools.partial(_layernorm_kernel, eps=eps),
        out_shape=jax.ShapeDtypeStruct((M, D), jnp.bfloat16),
        grid=(pl.cdiv(M, TM),),
        in_specs=[
            pl.BlockSpec((TM, D), lambda i: (i, 0)),
            pl.BlockSpec((1, D), lambda i: (0, 0)),
            pl.BlockSpec((1, D), lambda i: (0, 0)),
        ],
        out_specs=pl.BlockSpec((TM, D), lambda i: (i, 0)),
        compiler_params=_cparams("parallel"),
    )(x, gamma.reshape(1, D), beta.reshape(1, D))


def _heads_per_block(heads, head_dim):
    # Smallest head group whose merged width is lane-dense (multiple of 128);
    # fall back to all heads (width == D == full array dim) for tiny configs.
    for g in range(1, heads + 1):
        if heads % g == 0 and (g * head_dim) % 128 == 0:
            return g
    return heads


def pallas_attention(q, k, v, add_mask, *, heads):
    """q, k, v: [B, T, D] bf16 (heads packed along D); add_mask: [B, 1, T] additive f32.

    Grid = (batch, head_group): only a few heads of [T, T] scores live per step, and both
    output and inputs are lane-dense column blocks of width G*Dh (no XLA head transposes).
    Returns [B, T, D] bf16 with heads already merged.
    """
    B, T, D = q.shape
    Dh = D // heads
    G = _heads_per_block(heads, Dh)
    kernel = functools.partial(_attention_kernel, heads_in_block=G, head_dim=Dh,
                               scale=1.0 / float(Dh) ** 0.5)
    qkv_spec = pl.BlockSpec((None, T, G * Dh), lambda b, g: (b, 0, g))
    return pl.pallas_call(
        kernel,
        out_shape=jax.ShapeDtypeStruct((B, T, D), jnp.bfloat16),
        grid=(B, heads // G),
        in_specs=[
            qkv_spec, qkv_spec, qkv_spec,
            pl.BlockSpec((None, 1, T), lambda b, g: (b, 0, 0)),
        ],
        out_specs=pl.BlockSpec((None, T, G * Dh), lambda b, g: (b, 0, g)),
        compiler_params=_cparams("parallel", "parallel"),
    )(q, k, v, add_mask)


# --------------------------- parameter construction -------------------------

def init_params(key, *, vocab, max_pos, type_vocab, hidden, heads, inter,
                layers, num_classes):
    def nrm(k, shape, dtype=jnp.float32):
        return (jax.random.normal(k, shape, jnp.float32) * 0.02).astype(dtype)

    keys = iter(jax.random.split(key, 8 + layers * 16))
    p = {
        "word_emb": nrm(next(keys), (vocab, hidden)),
        "pos_emb": nrm(next(keys), (max_pos, hidden)),
        "type_emb": nrm(next(keys), (type_vocab, hidden)),
        "emb_ln_g": jnp.ones((hidden,), jnp.float32),
        "emb_ln_b": jnp.zeros((hidden,), jnp.float32),
        "pool_w": nrm(next(keys), (hidden, hidden)),
        "pool_b": jnp.zeros((hidden,), jnp.float32),
        "cls_w": nrm(next(keys), (hidden, num_classes)),
        "cls_b": jnp.zeros((num_classes,), jnp.float32),
        "layers": [],
    }
    for _ in range(layers):
        p["layers"].append({
            # matmul weights stored bf16 (MXU-native); biases / LN params stay f32.
            "wqkv": nrm(next(keys), (hidden, 3 * hidden), jnp.bfloat16),
            "bqkv": jnp.zeros((3 * hidden,), jnp.float32),
            "wo": nrm(next(keys), (hidden, hidden), jnp.bfloat16),
            "bo": jnp.zeros((hidden,), jnp.float32),
            "ln1_g": jnp.ones((hidden,), jnp.float32),
            "ln1_b": jnp.zeros((hidden,), jnp.float32),
            "wi": nrm(next(keys), (hidden, inter), jnp.bfloat16),
            "bi": jnp.zeros((inter,), jnp.float32),
            "wo2": nrm(next(keys), (inter, hidden), jnp.bfloat16),
            "bo2": jnp.zeros((hidden,), jnp.float32),
            "ln2_g": jnp.ones((hidden,), jnp.float32),
            "ln2_b": jnp.zeros((hidden,), jnp.float32),
        })
    return p


# ------------------------------ model forward -------------------------------

def treccar_forward(params, seq, attn_masks, type_ids, *, heads):
    B, T = seq.shape
    D = params["word_emb"].shape[1]

    # Embeddings (gather is glue) + LayerNorm (Pallas, bf16 out).
    emb = (params["word_emb"][seq]
           + params["pos_emb"][None, :T, :]
           + params["type_emb"][type_ids])
    h = pallas_layernorm(emb.reshape(B * T, D),
                         params["emb_ln_g"], params["emb_ln_b"])        # [B*T, D] bf16

    # Additive attention mask: 0 for real tokens, -10000 for PAD.
    add_mask = (1.0 - attn_masks.astype(jnp.float32)) * -10000.0
    add_mask = add_mask[:, None, :]                                     # [B, 1, T]

    for lyr in params["layers"]:
        x = h                                                           # [B*T, D] bf16
        # Fused QKV projection + split (single x read, three lane-dense bf16 outputs).
        q, k, v = pallas_qkv(x, lyr["wqkv"], lyr["bqkv"])               # each [B*T, D]
        ctx = pallas_attention(q.reshape(B, T, D), k.reshape(B, T, D),
                               v.reshape(B, T, D), add_mask, heads=heads)  # [B, T, D] bf16
        # attn-output projection with residual-add + LayerNorm fused in the epilogue.
        x = pallas_linear_res_ln(ctx.reshape(B * T, D), lyr["wo"], lyr["bo"],
                                 x, lyr["ln1_g"], lyr["ln1_b"])         # [B*T, D] bf16
        ffn = pallas_linear(x, lyr["wi"], lyr["bi"], activation="gelu")  # [B*T, 4D] bf16
        # FFN-down projection with residual-add + LayerNorm fused in the epilogue.
        h = pallas_linear_res_ln(ffn, lyr["wo2"], lyr["bo2"],
                                 x, lyr["ln2_g"], lyr["ln2_b"])         # [B*T, D] bf16

    seq_out = h.reshape(B, T, D)
    cls_tok = seq_out[:, 0, :].astype(jnp.float32)                      # [B, D]
    # Pooler + classifier are tiny (B rows, lane width < 128): plain XLA ops.
    pooled = jnp.tanh(cls_tok @ params["pool_w"] + params["pool_b"])    # BERT pooler (= cls_head)
    logits = pooled @ params["cls_w"] + params["cls_b"]                 # self.cls_layer
    return logits


# ----------------------------------- main ------------------------------------

if __name__ == "__main__":
    B, T = 2, 8
    VOCAB, MAX_POS, TYPE_VOCAB = 100, 16, 2
    HIDDEN, HEADS, INTER, LAYERS = 32, 2, 64, 2
    NUM_CLASSES = 3

    key = jax.random.PRNGKey(0)
    pkey, skey, mkey, tkey = jax.random.split(key, 4)

    params = init_params(pkey, vocab=VOCAB, max_pos=MAX_POS, type_vocab=TYPE_VOCAB,
                         hidden=HIDDEN, heads=HEADS, inter=INTER,
                         layers=LAYERS, num_classes=NUM_CLASSES)

    seq = jax.random.randint(skey, (B, T), 0, VOCAB, dtype=jnp.int32)
    # last two tokens of batch element 1 are PAD
    attn_masks = jnp.ones((B, T), jnp.int32).at[1, -2:].set(0)
    type_ids = jax.random.randint(tkey, (B, T), 0, TYPE_VOCAB, dtype=jnp.int32)

    logits = treccar_forward(params, seq, attn_masks, type_ids, heads=HEADS)
    logits = jax.block_until_ready(logits)
    assert logits.shape == (B, NUM_CLASSES)
    print("KERNEL_OK")
</pallas_src>

<mosaic_0001>
module attributes {stable_mosaic.version = 11 : i64} {
  func.func @_layernorm_kernel(%arg0: i32, %arg1: memref<16x32xf32, #tpu.memory_space<vmem>>, %arg2: memref<1x32xf32, #tpu.memory_space<vmem>>, %arg3: memref<1x32xf32, #tpu.memory_space<vmem>>, %arg4: memref<16x32xbf16, #tpu.memory_space<vmem>>) attributes {dimension_semantics = [#tpu.dimension_semantics<parallel>], iteration_bounds = array<i64: 1>, scalar_prefetch = 0 : i64, scratch_operands = 0 : i64, tpu.core_type = #tpu.core_type<tc>, window_params = [{transform_indices = @transform_0, window_bounds = array<i64: 16, 32>}, {pipeline_mode = #tpu.pipeline_mode<synchronous>, transform_indices = @transform_1, window_bounds = array<i64: 1, 32>}, {pipeline_mode = #tpu.pipeline_mode<synchronous>, transform_indices = @transform_2, window_bounds = array<i64: 1, 32>}, {transform_indices = @transform_3, window_bounds = array<i64: 16, 32>}]} {
    %c0 = arith.constant 0 : index
    %c0_0 = arith.constant 0 : index
    %0 = vector.load %arg1[%c0, %c0_0] : memref<16x32xf32, #tpu.memory_space<vmem>>, vector<16x32xf32>
    %cst = arith.constant dense<0.000000e+00> : vector<16xf32>
    %1 = vector.multi_reduction <add>, %0, %cst [1] : vector<16x32xf32> to vector<16xf32>
    %2 = vector.shape_cast %1 : vector<16xf32> to vector<16x1xf32>
    %cst_1 = arith.constant 3.200000e+01 : f32
    %3 = vector.broadcast %cst_1 : f32 to vector<16x1xf32>
    %4 = arith.divf %2, %3 : vector<16x1xf32>
    %5 = vector.broadcast %4 : vector<16x1xf32> to vector<16x32xf32>
    %6 = arith.subf %0, %5 : vector<16x32xf32>
    %7 = vector.broadcast %4 : vector<16x1xf32> to vector<16x32xf32>
    %8 = arith.subf %0, %7 : vector<16x32xf32>
    %9 = arith.mulf %6, %8 : vector<16x32xf32>
    %cst_2 = arith.constant dense<0.000000e+00> : vector<16xf32>
    %10 = vector.multi_reduction <add>, %9, %cst_2 [1] : vector<16x32xf32> to vector<16xf32>
    %11 = vector.shape_cast %10 : vector<16xf32> to vector<16x1xf32>
    %cst_3 = arith.constant 3.200000e+01 : f32
    %12 = vector.broadcast %cst_3 : f32 to vector<16x1xf32>
    %13 = arith.divf %11, %12 : vector<16x1xf32>
    %cst_4 = arith.constant 9.99999996E-13 : f32
    %14 = vector.broadcast %cst_4 : f32 to vector<16x1xf32>
    %15 = arith.addf %13, %14 : vector<16x1xf32>
    %16 = math.rsqrt %15 : vector<16x1xf32>
    %17 = vector.broadcast %4 : vector<16x1xf32> to vector<16x32xf32>
    %18 = arith.subf %0, %17 : vector<16x32xf32>
    %19 = vector.broadcast %16 : vector<16x1xf32> to vector<16x32xf32>
    %20 = arith.mulf %18, %19 : vector<16x32xf32>
    %c0_5 = arith.constant 0 : index
    %c0_6 = arith.constant 0 : index
    %21 = vector.load %arg2[%c0_5, %c0_6] : memref<1x32xf32, #tpu.memory_space<vmem>>, vector<1x32xf32>
    %22 = vector.broadcast %21 : vector<1x32xf32> to vector<16x32xf32>
    %23 = arith.mulf %20, %22 : vector<16x32xf32>
    %c0_7 = arith.constant 0 : index
    %c0_8 = arith.constant 0 : index
    %24 = vector.load %arg3[%c0_7, %c0_8] : memref<1x32xf32, #tpu.memory_space<vmem>>, vector<1x32xf32>
    %25 = vector.broadcast %24 : vector<1x32xf32> to vector<16x32xf32>
    %26 = arith.addf %23, %25 : vector<16x32xf32>
    %27 = arith.truncf %26 : vector<16x32xf32> to vector<16x32xbf16>
    %c0_9 = arith.constant 0 : index
    %c0_10 = arith.constant 0 : index
    %28 = vector.load %arg4[%c0_9, %c0_10] : memref<16x32xbf16, #tpu.memory_space<vmem>>, vector<16x32xbf16>
    tpu.vector_store %arg4[%c0_9, %c0_10], %27 {strides = array<i32>} : memref<16x32xbf16, #tpu.memory_space<vmem>>, vector<16x32xbf16>,
    return
  }
  func.func @transform_0(%arg0: i32) -> (i32, i32) {
    %c0_i32 = arith.constant 0 : i32
    %c0_i32_0 = arith.constant 0 : i32
    return %arg0, %c0_i32 : i32, i32
  }
  func.func @transform_1(%arg0: i32) -> (i32, i32) {
    %c0_i32 = arith.constant 0 : i32
    %c0_i32_0 = arith.constant 0 : i32
    %c0_i32_1 = arith.constant 0 : i32
    return %c0_i32, %c0_i32_0 : i32, i32
  }
  func.func @transform_2(%arg0: i32) -> (i32, i32) {
    %c0_i32 = arith.constant 0 : i32
    %c0_i32_0 = arith.constant 0 : i32
    %c0_i32_1 = arith.constant 0 : i32
    return %c0_i32, %c0_i32_0 : i32, i32
  }
  func.func @transform_3(%arg0: i32) -> (i32, i32) {
    %c0_i32 = arith.constant 0 : i32
    %c0_i32_0 = arith.constant 0 : i32
    return %arg0, %c0_i32 : i32, i32
  }
}

</mosaic_0001>

<llo_original>
// kernel: tpu_custom_call.1
$region0: #{tpu_custom_call.1}
  #allocation0 [shape = 'u32[]', space=smem, size = 0x4, offset = 0x4, fixed_abs, tag = 'smem constant byte address 0x4 - core index']
  #allocation1 [shape = 'u32[144,128]{1,0:T(1,128)}', space=vmem, size = 0x12000, scoped, tag = 'internal scratch']
  %s0 = inlined_call_operand.hbm [shape: f32[16,32], index: 0, kind: input, shape index: {}]
  %s1 = inlined_call_operand.vmem [shape: f32[1,32], index: 1, kind: input, shape index: {}]
  %s2 = inlined_call_operand.vmem [shape: f32[1,32], index: 2, kind: input, shape index: {}]
  %s3 = inlined_call_operand.hbm [shape: bf16[16,32], index: 3, kind: output, shape index: {}]
  %s4 = sld [smem:[#allocation0]]
  $region26: #{tpu_custom_call.1} parent=0
    _
  %s6 = ssub.s32 1, %s4
  %s7 = scalar_select 0, %s6, %s4
  $region1: #{tpu_custom_call.1} parent=0
    #allocation2 [shape = 'u8[8192]{0}', space=vmem, size = 0x2000, scoped, tag = 'input window, operand 0, single buffered']
    #allocation3 [shape = 's32[1]{0}', space=sflag, size = 0x4, scoped, tag = 'scoped memory for tpu_custom_call.1']
    #allocation4 [shape = 's32[1]{0}', space=sflag, size = 0x4, scoped, tag = 'scoped memory for tpu_custom_call.1']
    #allocation5 [shape = 'u8[4096]{0}', space=vmem, size = 0x1000, scoped, tag = 'output window, operand 0, single buffered']
    %8 = vsyncpa [#allocation3], 0
    %9 = vsyncpa [#allocation4], 0
    // Predicated region
    $region2: #{tpu_custom_call.1} parent=1 // pred_check
      _
    $region3: #{tpu_custom_call.1} parent=1 // pred_check_branch
      %11 = sbr.rel (0) target = $region5
    $region4: #{tpu_custom_call.1} parent=1 // pred_region
      %s13 = ssub.s32 256, 256
      %14 = vsyncadd [#allocation3], %s13
      %s15 = sshll.u32 [#allocation2], 4
      %s16 = int_to_ptr.vmem [resolvable:$true] %s15
      %21 = dma.hbm_to_vmem [thread:$0]  %s0, 256, %s16, [#allocation3], 128, 128, 8
    $region5: #{tpu_custom_call.1} parent=1 // pred_fallthru
      _
    // Predicated region
    $region6: #{tpu_custom_call.1} parent=1 // pred_check
      _
    $region7: #{tpu_custom_call.1} parent=1 // pred_check_branch
      %23 = sbr.rel (0) target = $region9
    $region8: #{tpu_custom_call.1} parent=1 // pred_region
      _
    $region9: #{tpu_custom_call.1} parent=1 // pred_fallthru
      _
    // Predicated region
    $region10: #{tpu_custom_call.1} parent=1 // pred_check
      _
    $region11: #{tpu_custom_call.1} parent=1 // pred_check_branch
      %25 = sbr.rel (0) target = $region13
    $region12: #{tpu_custom_call.1} parent=1 // pred_region
      _
    $region13: #{tpu_custom_call.1} parent=1 // pred_fallthru
      _
    // Predicated region
    $region14: #{tpu_custom_call.1} parent=1 // pred_check
      _
    $region15: #{tpu_custom_call.1} parent=1 // pred_check_branch
      %27 = sbr.rel (0) target = $region17
    $region16: #{tpu_custom_call.1} parent=1 // pred_region
      %28 = dma.done [#allocation3], 256
    $region17: #{tpu_custom_call.1} parent=1 // pred_fallthru
      _
    %v29 = vld [vmem:[#allocation2] sm:$0xff]
    %v30 = vld [vmem:[#allocation2 + $0x8] sm:$0xff]
    %vm31 = vcmask 261120
    %v32 = vsel %vm31, %v29, 0.0
    %33 = vadd.xlane.f32.xlu0 %v32
    %v34 = vpop.xlane.xlu0 %33
    %v35 = vsel %vm31, %v30, 0.0
    %36 = vadd.xlane.f32.xlu0 %v35
    %v37 = vpop.xlane.xlu0 %36
    %v38 = vrcp.pop 32.0
    %v39 = vmul.f32 %v34, %v38
    %v40 = vmul.f32 %v37, %v38
    %v41 = vsub.f32 %v29, %v39
    %v42 = vsub.f32 %v30, %v40
    %v43 = vmul.f32 %v41, %v41
    %v44 = vmul.f32 %v42, %v42
    %v45 = vsel %vm31, %v43, 0.0
    %46 = vadd.xlane.f32.xlu0 %v45
    %v47 = vpop.xlane.xlu0 %46
    %v48 = vsel %vm31, %v44, 0.0
    %49 = vadd.xlane.f32.xlu0 %v48
    %v50 = vpop.xlane.xlu0 %49
    %v51 = vmul.f32 %v47, %v38
    %v52 = vmul.f32 %v50, %v38
    %v53 = vadd.f32 %v51, 1e-12
    %v54 = vadd.f32 %v52, 1e-12
    %v55 = vrsqrt.pop %v53
    %v56 = vrsqrt.pop %v54
    %v57 = vmul.f32 %v41, %v55
    %v58 = vmul.f32 %v42, %v56
    %v59 = vld [vmem:[%s1] sm:$0x1]
    %v61 = vlaneseq
    %v62 = vshrl.u32 %v61, 7
    %v63 = vsub.s32 0, %v62
    %v64 = vrot.slane %v59, %v63
    %v66 = vmul.f32 %v57, %v64
    %v67 = vmul.f32 %v58, %v64
    %v68 = vld [vmem:[%s2] sm:$0x1]
    %v70 = vlaneseq
    %v71 = vshrl.u32 %v70, 7
    %v72 = vsub.s32 0, %v71
    %v73 = vrot.slane %v68, %v72
    %v75 = vadd.f32 %v66, %v73
    %v76 = vadd.f32 %v67, %v73
    %v77 = vpack.c.bf16 %v76, %v75
    %v79 = vunpack.c.l.b16 %v77
    %v80 = vunpack.c.h.b16 %v77
    %v81 = vpack.c.b16 %v79, %v79
    %v82 = vpack.c.b16 %v80, %v80
    %vm85 = vcmask 257024
    %86 = vst.msk [vmem:[#allocation5] sm:$0xf] %vm85, %v81
    %87 = vst.msk [vmem:[#allocation5 + $0x4] sm:$0xf] %vm85, %v82
    // Predicated region
    $region18: #{tpu_custom_call.1} parent=1 // pred_check
      _
    $region19: #{tpu_custom_call.1} parent=1 // pred_check_branch
      %89 = sbr.rel (0) target = $region21
    $region20: #{tpu_custom_call.1} parent=1 // pred_region
      %s91 = ssub.s32 128, 128
      %92 = vsyncadd [#allocation4], %s91
      %s93 = sshll.u32 [#allocation5], 4
      %s94 = int_to_ptr.vmem [resolvable:$true] %s93
      %99 = dma.vmem_to_hbm [thread:$0]  %s94, 128, %s3, [#allocation4], 64, 64, 4
    $region21: #{tpu_custom_call.1} parent=1 // pred_fallthru
      _
    // Predicated region
    $region22: #{tpu_custom_call.1} parent=1 // pred_check
      _
    $region23: #{tpu_custom_call.1} parent=1 // pred_check_branch
      %101 = sbr.rel (0) target = $region25
    $region24: #{tpu_custom_call.1} parent=1 // pred_region
      %102 = dma.done [#allocation4], 128
    $region25: #{tpu_custom_call.1} parent=1 // pred_fallthru
      _
    %103 = vsyncpa [#allocation3], 1
    %104 = vsyncpa [#allocation4], 1

</llo_original>
